<compile_context>
chip_gen: v5e
topology: v5e:2x2
jax: 0.10.0
libtpu: 0.0.40
codegen_flags: <defaults>
</compile_context>

<pallas_src>
import jax
import jax.numpy as jnp
from jax import lax
from jax.experimental import pallas as pl
from jax.experimental.pallas import tpu as pltpu


def _spherical_kernel(x_ref, o_ref, flag_ref):
    """Normalize each row of a (TM, D) tile along the last (lane) axis.

    Also emits per-row max|x| so the wrapper can implement the module's global
    all-zero short-circuit from a tiny (rows, 1) array instead of re-reading x.
    """
    x = x_ref[...]
    xf = x.astype(jnp.float32)  # no-op when the input is already f32
    sum_sq = jnp.sum(xf * xf, axis=-1, keepdims=True)
    # rsqrt on the EUP + one VPU multiply per element instead of TM*D divides.
    # rsqrt(0) = inf and 0 * inf = NaN, matching torch's 0/0 behaviour for
    # all-zero rows when the full tensor is not all-zero.
    inv_norm = lax.rsqrt(sum_sq)
    o_ref[...] = (xf * inv_norm).astype(o_ref.dtype)
    # Exact per-row "all zero?" indicator (max|x|, immune to x*x underflow,
    # so the passthrough condition matches torch's (x == 0).all() exactly).
    flag_ref[...] = jnp.max(jnp.abs(xf), axis=-1, keepdims=True)


def _pick_tile_rows(rows, d, dtype):
    """Row-tile size: ~2 MiB per input block per buffer.

    Big enough to amortize per-grid-step overhead (well past the measured
    ~512-row roofline plateau for D>=128), small enough that the
    double-buffered in+out tiles (~8 MiB total) stay well inside VMEM on
    v5e/v6e (128 MiB) and v7x (64 MiB)."""
    itemsize = jnp.dtype(dtype).itemsize
    # Sublane packing: 8 rows for 32-bit, 16 for bf16, 32 for int8/fp8.
    packing = 8 * max(1, 4 // itemsize)
    target_block_bytes = 2 * 1024 * 1024
    tm = target_block_bytes // max(1, d * itemsize)
    tm = max(packing, (tm // packing) * packing)
    tm = min(tm, 8192)
    if rows <= tm:
        return rows  # single full-extent block (always a legal block shape)
    return tm


def spherical(x, *, tile_rows=None):
    """Pallas implementation of Spherical(centering=False, dim=-1)."""
    orig_shape = x.shape
    D = orig_shape[-1]
    rows = 1
    for s in orig_shape[:-1]:
        rows *= s
    x2d = x.reshape(rows, D)

    tm = tile_rows if tile_rows is not None else _pick_tile_rows(rows, D, x.dtype)
    tm = min(tm, rows)
    grid = (pl.cdiv(rows, tm),)  # partial trailing block handled by Pallas

    normalized, row_max = pl.pallas_call(
        _spherical_kernel,
        out_shape=(
            jax.ShapeDtypeStruct((rows, D), x.dtype),
            jax.ShapeDtypeStruct((rows, 1), jnp.float32),
        ),
        grid_spec=pltpu.PrefetchScalarGridSpec(
            num_scalar_prefetch=0,
            grid=grid,
            in_specs=[pl.BlockSpec((tm, D), lambda i: (i, 0))],
            out_specs=[
                pl.BlockSpec((tm, D), lambda i: (i, 0)),
                pl.BlockSpec((tm, 1), lambda i: (i, 0)),
            ],
        ),
        compiler_params=pltpu.CompilerParams(
            # Row axis is embarrassingly parallel -> shard across TCs on v7x.
            dimension_semantics=("parallel",),
            # Raise v5e's 16 MiB scoped default; safe on v6e/v7x as well.
            vmem_limit_bytes=32 * 1024 * 1024,
        ),
    )(x2d)

    # Global all-zero short-circuit: `if (input == 0).all(): return input`.
    # In that branch the result is identically zero.  Decide from the tiny
    # (rows, 1) flag array and use lax.cond so the common (non-zero) path
    # returns `normalized` without an extra full-tensor select/copy pass.
    any_nonzero = jnp.any(row_max != 0.0)
    out2d = lax.cond(any_nonzero,
                     lambda n: n,                   # common path: identity
                     lambda n: jnp.zeros_like(n),   # rare path: zeros passthrough
                     normalized)
    return out2d.reshape(orig_shape)


if __name__ == "__main__":
    key = jax.random.PRNGKey(0)

    # 1) Small activation-like tensor: (batch=2, seq=8, hidden=128).
    x = jax.random.normal(key, (2, 8, 128), dtype=jnp.float32)
    out = jax.block_until_ready(spherical(x))
    ref = x / jnp.linalg.norm(x, axis=-1, keepdims=True)
    assert jnp.allclose(out, ref, atol=1e-5, rtol=1e-5), "mismatch vs reference (f32)"

    # 2) All-zero short-circuit path (must return zeros, not NaN).
    z = jnp.zeros((2, 8, 128), dtype=jnp.float32)
    outz = jax.block_until_ready(spherical(z))
    assert jnp.array_equal(outz, z), "all-zero input must pass through unchanged"

    # 3) Multi-block grid with a partial trailing block (rows=26, forced tm=8).
    x3 = jax.random.normal(jax.random.PRNGKey(1), (26, 128), dtype=jnp.float32)
    out3 = jax.block_until_ready(spherical(x3, tile_rows=8))
    ref3 = x3 / jnp.linalg.norm(x3, axis=-1, keepdims=True)
    assert jnp.allclose(out3, ref3, atol=1e-5, rtol=1e-5), "mismatch (partial block)"

    # 4) bf16 input (f32 accumulation inside the kernel).
    xb = jax.random.normal(jax.random.PRNGKey(2), (2, 24, 128)).astype(jnp.bfloat16)
    outb = jax.block_until_ready(spherical(xb))
    xbf = xb.astype(jnp.float32)
    refb = (xbf / jnp.linalg.norm(xbf, axis=-1, keepdims=True)).astype(jnp.bfloat16)
    assert jnp.allclose(outb.astype(jnp.float32), refb.astype(jnp.float32),
                        atol=2e-2, rtol=2e-2), "mismatch vs reference (bf16)"

    # 5) Mixed tensor with one all-zero row: torch gives 0/0 = NaN for that row
    #    (tensor is not globally zero), other rows normalize normally.
    x5 = jax.random.normal(jax.random.PRNGKey(3), (2, 8, 128), dtype=jnp.float32)
    x5 = x5.at[0, 3, :].set(0.0)
    out5 = jax.block_until_ready(spherical(x5))
    assert bool(jnp.all(jnp.isnan(out5[0, 3, :]))), "all-zero row must produce NaN"
    ref5 = x5 / jnp.linalg.norm(x5, axis=-1, keepdims=True)
    ok_rows = jnp.ones((2, 8), dtype=bool).at[0, 3].set(False)
    assert jnp.allclose(jnp.where(ok_rows[..., None], out5, 0.0),
                        jnp.where(ok_rows[..., None], ref5, 0.0),
                        atol=1e-5, rtol=1e-5), "mismatch on non-zero rows"

    print("KERNEL_OK")
</pallas_src>

<mosaic_0001>
module attributes {stable_mosaic.version = 11 : i64} {
  func.func @_spherical_kernel(%arg0: i32, %arg1: memref<16x128xf32, #tpu.memory_space<vmem>>, %arg2: memref<16x128xf32, #tpu.memory_space<vmem>>, %arg3: memref<16x1xf32, #tpu.memory_space<vmem>>) attributes {dimension_semantics = [#tpu.dimension_semantics<parallel>], iteration_bounds = array<i64: 1>, scalar_prefetch = 0 : i64, scratch_operands = 0 : i64, tpu.core_type = #tpu.core_type<tc>, window_params = [{transform_indices = @transform_0, window_bounds = array<i64: 16, 128>}, {transform_indices = @transform_1, window_bounds = array<i64: 16, 128>}, {transform_indices = @transform_2, window_bounds = array<i64: 16, 1>}]} {
    %c0 = arith.constant 0 : index
    %c0_0 = arith.constant 0 : index
    %0 = vector.load %arg1[%c0, %c0_0] : memref<16x128xf32, #tpu.memory_space<vmem>>, vector<16x128xf32>
    %1 = arith.mulf %0, %0 : vector<16x128xf32>
    %cst = arith.constant dense<0.000000e+00> : vector<16xf32>
    %2 = vector.multi_reduction <add>, %1, %cst [1] : vector<16x128xf32> to vector<16xf32>
    %3 = vector.shape_cast %2 : vector<16xf32> to vector<16x1xf32>
    %4 = math.rsqrt %3 : vector<16x1xf32>
    %5 = vector.broadcast %4 : vector<16x1xf32> to vector<16x128xf32>
    %6 = arith.mulf %0, %5 : vector<16x128xf32>
    %c0_1 = arith.constant 0 : index
    %c0_2 = arith.constant 0 : index
    %7 = vector.load %arg2[%c0_1, %c0_2] : memref<16x128xf32, #tpu.memory_space<vmem>>, vector<16x128xf32>
    tpu.vector_store %arg2[%c0_1, %c0_2], %6 {strides = array<i32>} : memref<16x128xf32, #tpu.memory_space<vmem>>, vector<16x128xf32>,
    %8 = math.absf %0 : vector<16x128xf32>
    %cst_3 = arith.constant dense<0xFF800000> : vector<16xf32>
    %9 = vector.multi_reduction <maximumf>, %8, %cst_3 [1] : vector<16x128xf32> to vector<16xf32>
    %10 = vector.shape_cast %9 : vector<16xf32> to vector<16x1xf32>
    %c0_4 = arith.constant 0 : index
    %c0_5 = arith.constant 0 : index
    %11 = vector.load %arg3[%c0_4, %c0_5] : memref<16x1xf32, #tpu.memory_space<vmem>>, vector<16x1xf32>
    tpu.vector_store %arg3[%c0_4, %c0_5], %10 {strides = array<i32>} : memref<16x1xf32, #tpu.memory_space<vmem>>, vector<16x1xf32>,
    return
  }
  func.func @transform_0(%arg0: i32) -> (i32, i32) {
    %c0_i32 = arith.constant 0 : i32
    %c0_i32_0 = arith.constant 0 : i32
    return %arg0, %c0_i32 : i32, i32
  }
  func.func @transform_1(%arg0: i32) -> (i32, i32) {
    %c0_i32 = arith.constant 0 : i32
    %c0_i32_0 = arith.constant 0 : i32
    return %arg0, %c0_i32 : i32, i32
  }
  func.func @transform_2(%arg0: i32) -> (i32, i32) {
    %c0_i32 = arith.constant 0 : i32
    %c0_i32_0 = arith.constant 0 : i32
    return %arg0, %c0_i32 : i32, i32
  }
}

</mosaic_0001>

<llo_original>
// kernel: tpu_custom_call.1
$region0: #{tpu_custom_call.1}
  #allocation0 [shape = 'u32[]', space=smem, size = 0x4, offset = 0x4, fixed_abs, tag = 'smem constant byte address 0x4 - core index']
  #allocation1 [shape = 'u32[72,128]{1,0:T(1,128)}', space=vmem, size = 0x9000, scoped, tag = 'internal scratch']
  %s0 = inlined_call_operand.hbm [shape: f32[16,128], index: 0, kind: input, shape index: {}]
  %s1 = inlined_call_operand.hbm [shape: f32[16,128], index: 1, kind: output, shape index: {0}]
  %s2 = inlined_call_operand.vmem [shape: f32[16,1], index: 2, kind: output, shape index: {1}]
  %3 = xla_tuple %s1, %s2
  %s4 = sld [smem:[#allocation0]]
  $region26: #{tpu_custom_call.1} parent=0
    _
  %s6 = ssub.s32 1, %s4
  %s7 = scalar_select 0, %s6, %s4
  $region1: #{tpu_custom_call.1} parent=0
    #allocation2 [shape = 'u8[8192]{0}', space=vmem, size = 0x2000, scoped, tag = 'input window, operand 0, single buffered']
    #allocation3 [shape = 's32[1]{0}', space=sflag, size = 0x4, scoped, tag = 'scoped memory for tpu_custom_call.1']
    #allocation4 [shape = 's32[1]{0}', space=sflag, size = 0x4, scoped, tag = 'scoped memory for tpu_custom_call.1']
    #allocation5 [shape = 'u8[8192]{0}', space=vmem, size = 0x2000, scoped, tag = 'output window, operand 0, single buffered']
    %8 = vsyncpa [#allocation3], 0
    %9 = vsyncpa [#allocation4], 0
    // Predicated region
    $region2: #{tpu_custom_call.1} parent=1 // pred_check
      _
    $region3: #{tpu_custom_call.1} parent=1 // pred_check_branch
      %11 = sbr.rel (0) target = $region5
    $region4: #{tpu_custom_call.1} parent=1 // pred_region
      %13 = vsyncadd [#allocation3], 0
      %s14 = sshll.u32 %s0, 4
      %s15 = int_to_ptr.hbm [resolvable:$true] %s14
      %s16 = sshll.u32 [#allocation2], 4
      %s17 = int_to_ptr.vmem [resolvable:$true] %s16
      %22 = dma.hbm_to_vmem [thread:$0]  %s15, 256, %s17, [#allocation3], 128, 128, 8
    $region5: #{tpu_custom_call.1} parent=1 // pred_fallthru
      _
    // Predicated region
    $region6: #{tpu_custom_call.1} parent=1 // pred_check
      _
    $region7: #{tpu_custom_call.1} parent=1 // pred_check_branch
      %24 = sbr.rel (0) target = $region9
    $region8: #{tpu_custom_call.1} parent=1 // pred_region
      %26 = dma.done [#allocation3], 256
    $region9: #{tpu_custom_call.1} parent=1 // pred_fallthru
      _
    %v27 = vld [vmem:[#allocation2] sm:$0xff]
    %v28 = vld [vmem:[#allocation2 + $0x8] sm:$0xff]
    %v29 = vmul.f32 %v27, %v27
    %v30 = vmul.f32 %v28, %v28
    %31 = vadd.xlane.f32.xlu0 %v29
    %v32 = vpop.xlane.xlu0 %31
    %33 = vadd.xlane.f32.xlu0 %v30
    %v34 = vpop.xlane.xlu0 %33
    %v35 = vrsqrt.pop %v32
    %v36 = vmul.f32 %v35, %v32
    %v37 = vmul.f32 %v36, %v35
    %v38 = vmul.f32 0.5, %v37
    %v39 = vsub.f32 1.5, %v38
    %v40 = vmul.f32 %v35, %v39
    %vm41 = vweird.f32 %v32
    %vm42 = vweird.f32 %v35
    %vm43 = vmor %vm41, %vm42
    %v44 = vsel %vm43, %v35, %v40
    %v45 = vrsqrt.pop %v34
    %v46 = vmul.f32 %v45, %v34
    %v47 = vmul.f32 %v46, %v45
    %v48 = vmul.f32 0.5, %v47
    %v49 = vsub.f32 1.5, %v48
    %v50 = vmul.f32 %v45, %v49
    %vm51 = vweird.f32 %v34
    %vm52 = vweird.f32 %v45
    %vm53 = vmor %vm51, %vm52
    %v54 = vsel %vm53, %v45, %v50
    %v55 = vmul.f32 %v27, %v44
    %v56 = vmul.f32 %v28, %v54
    %57 = vst [vmem:[#allocation5] sm:$0xff] %v55
    %58 = vst [vmem:[#allocation5 + $0x8] sm:$0xff] %v56
    %v59 = vand.u32 2147483647, %v27
    %v60 = vand.u32 2147483647, %v28
    %61 = vmax.xlane.f32.xlu0 %v59
    %v62 = vpop.xlane.xlu0 %61
    %63 = vmax.xlane.f32.xlu0 %v60
    %v64 = vpop.xlane.xlu0 %63
    %vm65 = vcmask 7168
    %66 = vst.msk [vmem:[%s2] sm:$0xff] %vm65, %v62
    %67 = vst.msk [vmem:[%s2 + $0x8] sm:$0xff] %vm65, %v64
    // Predicated region
    $region10: #{tpu_custom_call.1} parent=1 // pred_check
      _
    $region11: #{tpu_custom_call.1} parent=1 // pred_check_branch
      %69 = sbr.rel (0) target = $region13
    $region12: #{tpu_custom_call.1} parent=1 // pred_region
      %71 = vsyncadd [#allocation4], 0
      %s72 = sshll.u32 [#allocation5], 4
      %s73 = int_to_ptr.vmem [resolvable:$true] %s72
      %s74 = sshll.u32 %s1, 4
      %s75 = int_to_ptr.hbm [resolvable:$true] %s74
      %80 = dma.vmem_to_hbm [thread:$0]  %s73, 256, %s75, [#allocation4], 128, 128, 8
    $region13: #{tpu_custom_call.1} parent=1 // pred_fallthru
      _
    // Predicated region
    $region14: #{tpu_custom_call.1} parent=1 // pred_check
      _
    $region15: #{tpu_custom_call.1} parent=1 // pred_check_branch
      %82 = sbr.rel (0) target = $region17
    $region16: #{tpu_custom_call.1} parent=1 // pred_region
      _
    $region17: #{tpu_custom_call.1} parent=1 // pred_fallthru
      _
    // Predicated region
    $region18: #{tpu_custom_call.1} parent=1 // pred_check
      _
    $region19: #{tpu_custom_call.1} parent=1 // pred_check_branch
      %84 = sbr.rel (0) target = $region21
    $region20: #{tpu_custom_call.1} parent=1 // pred_region
      %86 = dma.done [#allocation4], 256
    $region21: #{tpu_custom_call.1} parent=1 // pred_fallthru
      _
    // Predicated region
    $region22: #{tpu_custom_call.1} parent=1 // pred_check
      _
    $region23: #{tpu_custom_call.1} parent=1 // pred_check_branch
      %88 = sbr.rel (0) target = $region25
    $region24: #{tpu_custom_call.1} parent=1 // pred_region
      _
    $region25: #{tpu_custom_call.1} parent=1 // pred_fallthru
      _
    %89 = vsyncpa [#allocation3], 1
    %90 = vsyncpa [#allocation4], 1

</llo_original>
